<compile_context>
chip_gen: v7x
topology: tpu7x:2x2x1
jax: 0.10.0
libtpu: 0.0.40
codegen_flags: <defaults>
</compile_context>

<pallas_src>
import functools

import jax
import jax.numpy as jnp
from jax.experimental import pallas as pl
from jax.experimental.pallas import tpu as pltpu


def _c4_roll_kernel(p_ref, x_ref, o_ref, *, C):
    """One grid step over G groups.

    p_ref: (3, HW, HW)   rot90/rot180/rot270 permutation matrices (grid-invariant)
    x_ref: (G, 4*C, HW)  rows ordered (orientation u, channel c), lane-dense HW
    o_ref: (G, 16*C, HW) rows ordered (shift t, stack slot s, channel c)
       o[g, (4*t + s)*C + c] = rot_s(x[g, ((s + t) % 4)*C + c])
    """
    G, four_c, HW = x_ref.shape
    x = x_ref[...]

    # s == 0: identity slab, pure copies (no MXU work, native dtype).
    for t in range(4):
        o_ref[:, (4 * t) * C:(4 * t + 1) * C, :] = x[:, t * C:(t + 1) * C, :]

    # Single 2-D view for the matmuls.  The wrapper guarantees 4*C is a multiple of
    # the sublane count (else G == 1), so this collapse of the leading dim is free.
    x2 = x.reshape(G * four_c, HW)
    if x2.dtype != p_ref.dtype:
        x2 = x2.astype(p_ref.dtype)

    # s == 1, 2, 3: independent permutation matmuls; one rotated temp live at a time.
    for s in (1, 2, 3):
        r = jnp.dot(x2, p_ref[s - 1], preferred_element_type=jnp.float32)
        r = r.reshape(G, four_c, HW).astype(o_ref.dtype)
        for t in range(4):
            u = (s + t) % 4
            o_ref[:, (4 * t + s) * C:(4 * t + s + 1) * C, :] = \
                r[:, u * C:(u + 1) * C, :]


def _rotation_permutation_matrices(H, W, dtype):
    """P_s with (x_flat @ P_s)[q] == rot_s(x)[q] for row-major flattened (H, W)."""
    HW = H * W
    i = jnp.arange(H)[:, None]
    j = jnp.arange(W)[None, :]
    src90 = (j * W + (H - 1 - i)).reshape(-1)              # out[i,j] = in[j,     H-1-i]
    src180 = ((H - 1 - i) * W + (W - 1 - j)).reshape(-1)   # out[i,j] = in[H-1-i, W-1-j]
    src270 = ((H - 1 - j) * W + i).reshape(-1)              # out[i,j] = in[H-1-j, i]
    p = jnp.arange(HW)[:, None]

    def mat(src):
        return (p == src[None, :]).astype(dtype)            # P[p, q] = 1 iff p == src(q)

    return jnp.stack([mat(src90), mat(src180), mat(src270)], axis=0)  # (3, HW, HW)


def c4_roll(x):
    """Pallas implementation of C4_Roll.forward (use_version2=False)."""
    B, C, H, W = x.shape
    assert B % 4 == 0, "batch must be divisible by 4"
    assert H == W, "C4 rotations require square feature maps"

    if x.dtype in (jnp.float32, jnp.bfloat16):
        mm_dtype = x.dtype                       # 0/1 permutation matmul is exact
    elif x.dtype == jnp.float16:
        mm_dtype = jnp.float32                   # exact: f16 values are f32-representable
    else:
        # TODO(synk): integer / float64 inputs need a non-MXU pure-data-movement
        # rotation path to stay exact; only float32/bfloat16/float16 supported here.
        raise NotImplementedError(f"c4_roll: unsupported dtype {x.dtype}")

    num_groups = B // 4
    HW = H * W
    itemsize = jnp.dtype(x.dtype).itemsize
    p_itemsize = jnp.dtype(mm_dtype).itemsize

    # ---- per-generation VMEM budget & block sizing --------------------------
    try:
        vmem_cap = int(pltpu.get_tpu_info().vmem_capacity_bytes)
    except Exception:
        vmem_cap = 64 * 1024 * 1024              # conservative (v7x-sized) fallback
    budget = min(64 * 1024 * 1024, int(0.7 * vmem_cap))  # ~64MiB v5e/v6e, ~44MiB v7x

    lane = pl.cdiv(HW, 128) * 128
    sub_x = max(8, 32 // itemsize)               # sublane multiple for x/out dtype
    sub_p = max(8, 32 // p_itemsize)
    pad = lambda r, s: pl.cdiv(r, s) * s

    in_pg = pad(4 * C, sub_x) * lane * itemsize            # input block per group
    out_pg = pad(16 * C, sub_x) * lane * itemsize          # output block per group
    tmp_pg = in_pg + 4 * C * lane * (4 + itemsize)         # x value + f32 acc + cast
    per_group = 2 * in_pg + 2 * out_pg + tmp_pg            # double-buffered in/out
    fixed = 2 * 3 * pad(HW, sub_p) * lane * p_itemsize     # P matrices (double-buffered)
    # TODO(synk): for large spatial maps the (HW, HW) permutation operand no longer
    # fits VMEM; a per-plane rotation formulation would be needed in that regime.

    G = max(1, min(num_groups, (budget - fixed) // per_group))
    if num_groups >= 2:                          # keep >= 2 grid steps (v7x: 2 TCs)
        G = min(G, pl.cdiv(num_groups, 2))
    if (4 * C) % sub_x != 0:
        G = 1                                    # keep the in-kernel 2-D view a free collapse
    grid = (pl.cdiv(num_groups, G),)             # ragged last block handled by Pallas

    vmem_limit = int(min(0.9 * vmem_cap, budget + 16 * 1024 * 1024))

    p_mats = _rotation_permutation_matrices(H, W, mm_dtype)          # (3, HW, HW)
    x3 = x.reshape(num_groups, 4 * C, HW)

    flops = 2 * 3 * (num_groups * 4 * C) * HW * HW
    bytes_accessed = num_groups * 20 * C * HW * itemsize + 3 * HW * HW * p_itemsize

    out3 = pl.pallas_call(
        functools.partial(_c4_roll_kernel, C=C),
        out_shape=jax.ShapeDtypeStruct((num_groups, 16 * C, HW), x.dtype),
        grid_spec=pltpu.PrefetchScalarGridSpec(
            num_scalar_prefetch=0,
            grid=grid,
            in_specs=[
                pl.BlockSpec((3, HW, HW), lambda i: (0, 0, 0)),       # invariant P
                pl.BlockSpec((G, 4 * C, HW), lambda i: (i, 0, 0)),
            ],
            out_specs=pl.BlockSpec((G, 16 * C, HW), lambda i: (i, 0, 0)),
        ),
        compiler_params=pltpu.CompilerParams(
            dimension_semantics=("parallel",),
            vmem_limit_bytes=vmem_limit),
        cost_estimate=pl.CostEstimate(
            flops=int(flops), transcendentals=0,
            bytes_accessed=int(bytes_accessed)),
    )(p_mats, x3)

    return out3.reshape(B, 4 * C, H, W)


def c4_roll_ref(x):
    """Pure-JAX reference mirroring the PyTorch module exactly."""
    B, C, H, W = x.shape
    xg = x.reshape(B // 4, 4, C, H, W)
    outs = []
    for t in range(4):
        perm = jnp.roll(xg, -t, axis=1)              # C4_Cyclic_Permutation(x, k=t)
        stacked = jnp.concatenate(
            [jnp.rot90(perm[:, s], s, axes=(2, 3)) for s in range(4)], axis=1)
        outs.append(stacked)                         # C4_Stack
    return jnp.stack(outs, axis=1).reshape(B, 4 * C, H, W)


if __name__ == "__main__":
    key = jax.random.PRNGKey(0)
    B, C, H, W = 8, 4, 16, 16  # B must be a multiple of 4; H == W
    x = jax.random.normal(key, (B, C, H, W), dtype=jnp.float32)

    out = jax.block_until_ready(c4_roll(x))
    ref = jax.block_until_ready(c4_roll_ref(x))

    assert out.shape == (B, 4 * C, H, W), out.shape
    assert jnp.allclose(out, ref, atol=0.0, rtol=0.0), "mismatch vs reference"
    print("KERNEL_OK")
</pallas_src>

<mosaic_0001>
module attributes {stable_mosaic.version = 11 : i64} {
  func.func @_c4_roll_kernel(%arg0: i32, %arg1: memref<3x256x256xf32, #tpu.memory_space<vmem>>, %arg2: memref<1x16x256xf32, #tpu.memory_space<vmem>>, %arg3: memref<1x64x256xf32, #tpu.memory_space<vmem>>) attributes {dimension_semantics = [#tpu.dimension_semantics<parallel>], iteration_bounds = array<i64: 2>, scalar_prefetch = 0 : i64, scratch_operands = 0 : i64, tpu.core_type = #tpu.core_type<tc>, window_params = [{pipeline_mode = #tpu.pipeline_mode<synchronous>, transform_indices = @transform_0, window_bounds = array<i64: 3, 256, 256>}, {transform_indices = @transform_1, window_bounds = array<i64: 1, 16, 256>}, {transform_indices = @transform_2, window_bounds = array<i64: 1, 64, 256>}]} {
    %c0 = arith.constant 0 : index
    %c0_0 = arith.constant 0 : index
    %c0_1 = arith.constant 0 : index
    %0 = vector.load %arg2[%c0, %c0_0, %c0_1] : memref<1x16x256xf32, #tpu.memory_space<vmem>>, vector<1x16x256xf32>
    %1 = vector.extract_strided_slice %0 {offsets = [0, 0, 0], sizes = [1, 4, 256], strides = [1, 1, 1]} : vector<1x16x256xf32> to vector<1x4x256xf32>
    %c0_2 = arith.constant 0 : index
    %c0_3 = arith.constant 0 : index
    %c0_4 = arith.constant 0 : index
    %2 = vector.load %arg3[%c0_2, %c0_3, %c0_4] : memref<1x64x256xf32, #tpu.memory_space<vmem>>, vector<1x4x256xf32>
    tpu.vector_store %arg3[%c0_2, %c0_3, %c0_4], %1 {strides = array<i32>} : memref<1x64x256xf32, #tpu.memory_space<vmem>>, vector<1x4x256xf32>,
    %3 = vector.extract_strided_slice %0 {offsets = [0, 4, 0], sizes = [1, 4, 256], strides = [1, 1, 1]} : vector<1x16x256xf32> to vector<1x4x256xf32>
    %c0_5 = arith.constant 0 : index
    %c16 = arith.constant 16 : index
    %c0_6 = arith.constant 0 : index
    %4 = vector.load %arg3[%c0_5, %c16, %c0_6] : memref<1x64x256xf32, #tpu.memory_space<vmem>>, vector<1x4x256xf32>
    tpu.vector_store %arg3[%c0_5, %c16, %c0_6], %3 {strides = array<i32>} : memref<1x64x256xf32, #tpu.memory_space<vmem>>, vector<1x4x256xf32>,
    %5 = vector.extract_strided_slice %0 {offsets = [0, 8, 0], sizes = [1, 4, 256], strides = [1, 1, 1]} : vector<1x16x256xf32> to vector<1x4x256xf32>
    %c0_7 = arith.constant 0 : index
    %c32 = arith.constant 32 : index
    %c0_8 = arith.constant 0 : index
    %6 = vector.load %arg3[%c0_7, %c32, %c0_8] : memref<1x64x256xf32, #tpu.memory_space<vmem>>, vector<1x4x256xf32>
    tpu.vector_store %arg3[%c0_7, %c32, %c0_8], %5 {strides = array<i32>} : memref<1x64x256xf32, #tpu.memory_space<vmem>>, vector<1x4x256xf32>,
    %7 = vector.extract_strided_slice %0 {offsets = [0, 12, 0], sizes = [1, 4, 256], strides = [1, 1, 1]} : vector<1x16x256xf32> to vector<1x4x256xf32>
    %c0_9 = arith.constant 0 : index
    %c48 = arith.constant 48 : index
    %c0_10 = arith.constant 0 : index
    %8 = vector.load %arg3[%c0_9, %c48, %c0_10] : memref<1x64x256xf32, #tpu.memory_space<vmem>>, vector<1x4x256xf32>
    tpu.vector_store %arg3[%c0_9, %c48, %c0_10], %7 {strides = array<i32>} : memref<1x64x256xf32, #tpu.memory_space<vmem>>, vector<1x4x256xf32>,
    %9 = vector.shape_cast %0 : vector<1x16x256xf32> to vector<16x256xf32>
    %c0_11 = arith.constant 0 : index
    %c0_12 = arith.constant 0 : index
    %c0_13 = arith.constant 0 : index
    %10 = vector.load %arg1[%c0_11, %c0_12, %c0_13] : memref<3x256x256xf32, #tpu.memory_space<vmem>>, vector<1x256x256xf32>
    %11 = vector.shape_cast %10 : vector<1x256x256xf32> to vector<256x256xf32>
    %cst = arith.constant dense<0.000000e+00> : vector<16x256xf32>
    %12 = tpu.matmul %9, %11, %cst {dimension_numbers = #tpu.dot_dimension_numbers<[1], [0], [0], [1], [0, 0, 1, 1], [], []>} : vector<16x256xf32>, vector<256x256xf32>, vector<16x256xf32> -> vector<16x256xf32>
    %13 = vector.shape_cast %12 : vector<16x256xf32> to vector<1x16x256xf32>
    %14 = vector.extract_strided_slice %13 {offsets = [0, 4, 0], sizes = [1, 4, 256], strides = [1, 1, 1]} : vector<1x16x256xf32> to vector<1x4x256xf32>
    %c0_14 = arith.constant 0 : index
    %c4 = arith.constant 4 : index
    %c0_15 = arith.constant 0 : index
    %15 = vector.load %arg3[%c0_14, %c4, %c0_15] : memref<1x64x256xf32, #tpu.memory_space<vmem>>, vector<1x4x256xf32>
    tpu.vector_store %arg3[%c0_14, %c4, %c0_15], %14 {strides = array<i32>} : memref<1x64x256xf32, #tpu.memory_space<vmem>>, vector<1x4x256xf32>,
    %16 = vector.extract_strided_slice %13 {offsets = [0, 8, 0], sizes = [1, 4, 256], strides = [1, 1, 1]} : vector<1x16x256xf32> to vector<1x4x256xf32>
    %c0_16 = arith.constant 0 : index
    %c20 = arith.constant 20 : index
    %c0_17 = arith.constant 0 : index
    %17 = vector.load %arg3[%c0_16, %c20, %c0_17] : memref<1x64x256xf32, #tpu.memory_space<vmem>>, vector<1x4x256xf32>
    tpu.vector_store %arg3[%c0_16, %c20, %c0_17], %16 {strides = array<i32>} : memref<1x64x256xf32, #tpu.memory_space<vmem>>, vector<1x4x256xf32>,
    %18 = vector.extract_strided_slice %13 {offsets = [0, 12, 0], sizes = [1, 4, 256], strides = [1, 1, 1]} : vector<1x16x256xf32> to vector<1x4x256xf32>
    %c0_18 = arith.constant 0 : index
    %c36 = arith.constant 36 : index
    %c0_19 = arith.constant 0 : index
    %19 = vector.load %arg3[%c0_18, %c36, %c0_19] : memref<1x64x256xf32, #tpu.memory_space<vmem>>, vector<1x4x256xf32>
    tpu.vector_store %arg3[%c0_18, %c36, %c0_19], %18 {strides = array<i32>} : memref<1x64x256xf32, #tpu.memory_space<vmem>>, vector<1x4x256xf32>,
    %20 = vector.extract_strided_slice %13 {offsets = [0, 0, 0], sizes = [1, 4, 256], strides = [1, 1, 1]} : vector<1x16x256xf32> to vector<1x4x256xf32>
    %c0_20 = arith.constant 0 : index
    %c52 = arith.constant 52 : index
    %c0_21 = arith.constant 0 : index
    %21 = vector.load %arg3[%c0_20, %c52, %c0_21] : memref<1x64x256xf32, #tpu.memory_space<vmem>>, vector<1x4x256xf32>
    tpu.vector_store %arg3[%c0_20, %c52, %c0_21], %20 {strides = array<i32>} : memref<1x64x256xf32, #tpu.memory_space<vmem>>, vector<1x4x256xf32>,
    %c1 = arith.constant 1 : index
    %c0_22 = arith.constant 0 : index
    %c0_23 = arith.constant 0 : index
    %22 = vector.load %arg1[%c1, %c0_22, %c0_23] : memref<3x256x256xf32, #tpu.memory_space<vmem>>, vector<1x256x256xf32>
    %23 = vector.shape_cast %22 : vector<1x256x256xf32> to vector<256x256xf32>
    %cst_24 = arith.constant dense<0.000000e+00> : vector<16x256xf32>
    %24 = tpu.matmul %9, %23, %cst_24 {dimension_numbers = #tpu.dot_dimension_numbers<[1], [0], [0], [1], [0, 0, 1, 1], [], []>} : vector<16x256xf32>, vector<256x256xf32>, vector<16x256xf32> -> vector<16x256xf32>
    %25 = vector.shape_cast %24 : vector<16x256xf32> to vector<1x16x256xf32>
    %26 = vector.extract_strided_slice %25 {offsets = [0, 8, 0], sizes = [1, 4, 256], strides = [1, 1, 1]} : vector<1x16x256xf32> to vector<1x4x256xf32>
    %c0_25 = arith.constant 0 : index
    %c8 = arith.constant 8 : index
    %c0_26 = arith.constant 0 : index
    %27 = vector.load %arg3[%c0_25, %c8, %c0_26] : memref<1x64x256xf32, #tpu.memory_space<vmem>>, vector<1x4x256xf32>
    tpu.vector_store %arg3[%c0_25, %c8, %c0_26], %26 {strides = array<i32>} : memref<1x64x256xf32, #tpu.memory_space<vmem>>, vector<1x4x256xf32>,
    %28 = vector.extract_strided_slice %25 {offsets = [0, 12, 0], sizes = [1, 4, 256], strides = [1, 1, 1]} : vector<1x16x256xf32> to vector<1x4x256xf32>
    %c0_27 = arith.constant 0 : index
    %c24 = arith.constant 24 : index
    %c0_28 = arith.constant 0 : index
    %29 = vector.load %arg3[%c0_27, %c24, %c0_28] : memref<1x64x256xf32, #tpu.memory_space<vmem>>, vector<1x4x256xf32>
    tpu.vector_store %arg3[%c0_27, %c24, %c0_28], %28 {strides = array<i32>} : memref<1x64x256xf32, #tpu.memory_space<vmem>>, vector<1x4x256xf32>,
    %30 = vector.extract_strided_slice %25 {offsets = [0, 0, 0], sizes = [1, 4, 256], strides = [1, 1, 1]} : vector<1x16x256xf32> to vector<1x4x256xf32>
    %c0_29 = arith.constant 0 : index
    %c40 = arith.constant 40 : index
    %c0_30 = arith.constant 0 : index
    %31 = vector.load %arg3[%c0_29, %c40, %c0_30] : memref<1x64x256xf32, #tpu.memory_space<vmem>>, vector<1x4x256xf32>
    tpu.vector_store %arg3[%c0_29, %c40, %c0_30], %30 {strides = array<i32>} : memref<1x64x256xf32, #tpu.memory_space<vmem>>, vector<1x4x256xf32>,
    %32 = vector.extract_strided_slice %25 {offsets = [0, 4, 0], sizes = [1, 4, 256], strides = [1, 1, 1]} : vector<1x16x256xf32> to vector<1x4x256xf32>
    %c0_31 = arith.constant 0 : index
    %c56 = arith.constant 56 : index
    %c0_32 = arith.constant 0 : index
    %33 = vector.load %arg3[%c0_31, %c56, %c0_32] : memref<1x64x256xf32, #tpu.memory_space<vmem>>, vector<1x4x256xf32>
    tpu.vector_store %arg3[%c0_31, %c56, %c0_32], %32 {strides = array<i32>} : memref<1x64x256xf32, #tpu.memory_space<vmem>>, vector<1x4x256xf32>,
    %c2 = arith.constant 2 : index
    %c0_33 = arith.constant 0 : index
    %c0_34 = arith.constant 0 : index
    %34 = vector.load %arg1[%c2, %c0_33, %c0_34] : memref<3x256x256xf32, #tpu.memory_space<vmem>>, vector<1x256x256xf32>
    %35 = vector.shape_cast %34 : vector<1x256x256xf32> to vector<256x256xf32>
    %cst_35 = arith.constant dense<0.000000e+00> : vector<16x256xf32>
    %36 = tpu.matmul %9, %35, %cst_35 {dimension_numbers = #tpu.dot_dimension_numbers<[1], [0], [0], [1], [0, 0, 1, 1], [], []>} : vector<16x256xf32>, vector<256x256xf32>, vector<16x256xf32> -> vector<16x256xf32>
    %37 = vector.shape_cast %36 : vector<16x256xf32> to vector<1x16x256xf32>
    %38 = vector.extract_strided_slice %37 {offsets = [0, 12, 0], sizes = [1, 4, 256], strides = [1, 1, 1]} : vector<1x16x256xf32> to vector<1x4x256xf32>
    %c0_36 = arith.constant 0 : index
    %c12 = arith.constant 12 : index
    %c0_37 = arith.constant 0 : index
    %39 = vector.load %arg3[%c0_36, %c12, %c0_37] : memref<1x64x256xf32, #tpu.memory_space<vmem>>, vector<1x4x256xf32>
    tpu.vector_store %arg3[%c0_36, %c12, %c0_37], %38 {strides = array<i32>} : memref<1x64x256xf32, #tpu.memory_space<vmem>>, vector<1x4x256xf32>,
    %40 = vector.extract_strided_slice %37 {offsets = [0, 0, 0], sizes = [1, 4, 256], strides = [1, 1, 1]} : vector<1x16x256xf32> to vector<1x4x256xf32>
    %c0_38 = arith.constant 0 : index
    %c28 = arith.constant 28 : index
    %c0_39 = arith.constant 0 : index
    %41 = vector.load %arg3[%c0_38, %c28, %c0_39] : memref<1x64x256xf32, #tpu.memory_space<vmem>>, vector<1x4x256xf32>
    tpu.vector_store %arg3[%c0_38, %c28, %c0_39], %40 {strides = array<i32>} : memref<1x64x256xf32, #tpu.memory_space<vmem>>, vector<1x4x256xf32>,
    %42 = vector.extract_strided_slice %37 {offsets = [0, 4, 0], sizes = [1, 4, 256], strides = [1, 1, 1]} : vector<1x16x256xf32> to vector<1x4x256xf32>
    %c0_40 = arith.constant 0 : index
    %c44 = arith.constant 44 : index
    %c0_41 = arith.constant 0 : index
    %43 = vector.load %arg3[%c0_40, %c44, %c0_41] : memref<1x64x256xf32, #tpu.memory_space<vmem>>, vector<1x4x256xf32>
    tpu.vector_store %arg3[%c0_40, %c44, %c0_41], %42 {strides = array<i32>} : memref<1x64x256xf32, #tpu.memory_space<vmem>>, vector<1x4x256xf32>,
    %44 = vector.extract_strided_slice %37 {offsets = [0, 8, 0], sizes = [1, 4, 256], strides = [1, 1, 1]} : vector<1x16x256xf32> to vector<1x4x256xf32>
    %c0_42 = arith.constant 0 : index
    %c60 = arith.constant 60 : index
    %c0_43 = arith.constant 0 : index
    %45 = vector.load %arg3[%c0_42, %c60, %c0_43] : memref<1x64x256xf32, #tpu.memory_space<vmem>>, vector<1x4x256xf32>
    tpu.vector_store %arg3[%c0_42, %c60, %c0_43], %44 {strides = array<i32>} : memref<1x64x256xf32, #tpu.memory_space<vmem>>, vector<1x4x256xf32>,
    return
  }
  func.func @transform_0(%arg0: i32) -> (i32, i32, i32) {
    %c0_i32 = arith.constant 0 : i32
    %c0_i32_0 = arith.constant 0 : i32
    %c0_i32_1 = arith.constant 0 : i32
    %c0_i32_2 = arith.constant 0 : i32
    return %c0_i32, %c0_i32_0, %c0_i32_1 : i32, i32, i32
  }
  func.func @transform_1(%arg0: i32) -> (i32, i32, i32) {
    %c0_i32 = arith.constant 0 : i32
    %c0_i32_0 = arith.constant 0 : i32
    %c0_i32_1 = arith.constant 0 : i32
    return %arg0, %c0_i32, %c0_i32_0 : i32, i32, i32
  }
  func.func @transform_2(%arg0: i32) -> (i32, i32, i32) {
    %c0_i32 = arith.constant 0 : i32
    %c0_i32_0 = arith.constant 0 : i32
    %c0_i32_1 = arith.constant 0 : i32
    return %arg0, %c0_i32, %c0_i32_0 : i32, i32, i32
  }
}

</mosaic_0001>

<llo_original>
// kernel: tpu_custom_call.1
$region0: #{tpu_custom_call.1}
  #allocation0 [shape = 'u32[]', space=smem, size = 0x4, offset = 0x4, fixed_abs, tag = 'smem constant byte address 0x4 - core index']
  #allocation1 [shape = 'u32[144,128]{1,0:T(1,128)}', space=vmem, size = 0x12000, scoped, tag = 'internal scratch']
  %s0 = inlined_call_operand.hbm [shape: f32[3,256,256], index: 0, kind: input, shape index: {}]
  %s1 = inlined_call_operand.hbm [shape: f32[2,16,256], index: 1, kind: input, shape index: {}]
  %s2 = inlined_call_operand.hbm [shape: f32[2,64,256], index: 2, kind: output, shape index: {}]
  %s3 = sld [smem:[#allocation0]]
  $region49: #{tpu_custom_call.1} parent=0
    _
  %s5 = ssub.s32 1, %s3
  %s6 = scalar_select 0, %s5, %s3
  $region1: #{tpu_custom_call.1} parent=0
    #allocation2 [shape = 'u8[786432]{0}', space=vmem, size = 0xc0000, scoped, tag = 'input window, operand 0, single buffered']
    #allocation3 [shape = 's32[2]{0}', space=sflag, size = 0x8, scoped, tag = 'scoped memory for tpu_custom_call.1']
    #allocation4 [shape = 's32[2]{0}', space=sflag, size = 0x8, scoped, tag = 'scoped memory for tpu_custom_call.1']
    #allocation5 [shape = 'u8[32768]{0}', space=vmem, size = 0x8000, scoped, tag = 'input window, operand 1']
    #allocation6 [shape = 's32[2]{0}', space=sflag, size = 0x8, scoped, tag = 'scoped memory for tpu_custom_call.1']
    #allocation7 [shape = 'u8[131072]{0}', space=vmem, size = 0x20000, scoped, tag = 'output window, operand 0']
    %7 = vsyncpa [#allocation3], 0
    %8 = vsyncpa [#allocation6], 0
    %s9 = scalar_lea.sflag [#allocation6], 1
    %10 = vsyncpa %s9, 0
    %11 = vsyncpa [#allocation4], 0
    %s12 = scalar_lea.sflag [#allocation4], 1
    %13 = vsyncpa %s12, 0
    loop: start=0, step=1, limit=4
    $region2: #{tpu_custom_call.1} parent=1 // loop_pre_header
      _
    $region3: #{tpu_custom_call.1} parent=1 // loop_header
      %s15 = sphi 0, %s19
      %p16 = scmp.ge.s32.totalorder %s15, 4
      %s23 = sphi 0, %s23
      %s25 = sphi 0, %s23
      %s26 = sphi 0, %s25
      %s40 = sphi 0, %s26
      %s46 = sphi 0, %s48
      %s49 = sphi 0, %s46
      %s50 = sphi 0, %s49
      %s66 = sphi 0, %s50
      %s72 = sphi 0, %s74
      %s75 = sphi 0, %s72
      %s76 = sphi 0, %s75
      %s92 = sphi 0, %s76
    $region4: #{tpu_custom_call.1} parent=1 // loop_header_branch
      %18 = sbr.rel (%p16) target = $region8
    $region5: #{tpu_custom_call.1} parent=1 // loop_body
      %s20 = ssub.s32 %s15, 1
      %s21 = ssub.s32 %s15, 2
      %s22 = sadd.s32 %s15, 1
      %s24 = sadd.s32 %s23, 1
      %p27 = scmp.eq.s32.totalorder %s15, 1
      %p28 = scmp.ne.s32.totalorder %s23, %s25
      %p29 = scmp.eq.s32.totalorder %s15, 0
      %p30 = por %p28, %p29
      %p31 = scmp.ne.s32.totalorder %s23, %s25
      %p32 = scmp.eq.s32.totalorder %s20, 1
      %p33 = por %p31, %p32
      %p34 = scmp.ne.s32.totalorder %s25, %s26
      %p35 = scmp.eq.s32.totalorder %s20, 0
      %p36 = por %p34, %p35
      %p37 = scmp.ne.s32.totalorder %s25, %s26
      %p38 = scmp.eq.s32.totalorder %s21, 1
      %p39 = por %p37, %p38
      %p41 = scmp.ne.s32.totalorder %s26, %s40
      %p42 = scmp.eq.s32.totalorder %s21, 0
      %p43 = por %p41, %p42
      %s44 = ssub.s32 %s15, %s22
      %p45 = scmp.eq.s32.totalorder %s44, 0
      %s47 = sadd.s32 %s46, 1
      %s48 = scalar_select %p45, %s46, %s47
      %p51 = pneg %p45
      %p52 = scmp.eq.s32.totalorder %s15, 1
      %p53 = por %p51, %p52
      %p54 = scmp.ne.s32.totalorder %s46, %s49
      %p55 = scmp.eq.s32.totalorder %s15, 0
      %p56 = por %p54, %p55
      %p57 = scmp.ne.s32.totalorder %s46, %s49
      %p58 = scmp.eq.s32.totalorder %s20, 1
      %p59 = por %p57, %p58
      %p60 = scmp.ne.s32.totalorder %s49, %s50
      %p61 = scmp.eq.s32.totalorder %s20, 0
      %p62 = por %p60, %p61
      %p63 = scmp.ne.s32.totalorder %s49, %s50
      %p64 = scmp.eq.s32.totalorder %s21, 1
      %p65 = por %p63, %p64
      %p67 = scmp.ne.s32.totalorder %s50, %s66
      %p68 = scmp.eq.s32.totalorder %s21, 0
      %p69 = por %p67, %p68
      %s70 = ssub.s32 %s15, %s22
      %p71 = scmp.eq.s32.totalorder %s70, 0
      %s73 = sadd.s32 %s72, 1
      %s74 = scalar_select %p71, %s72, %s73
      %p77 = pneg %p71
      %p78 = scmp.eq.s32.totalorder %s15, 1
      %p79 = por %p77, %p78
      %p80 = scmp.ne.s32.totalorder %s72, %s75
      %p81 = scmp.eq.s32.totalorder %s15, 0
      %p82 = por %p80, %p81
      %p83 = scmp.ne.s32.totalorder %s72, %s75
      %p84 = scmp.eq.s32.totalorder %s20, 1
      %p85 = por %p83, %p84
      %p86 = scmp.ne.s32.totalorder %s75, %s76
      %p87 = scmp.eq.s32.totalorder %s20, 0
      %p88 = por %p86, %p87
      %p89 = scmp.ne.s32.totalorder %s75, %s76
      %p90 = scmp.eq.s32.totalorder %s21, 1
      %p91 = por %p89, %p90
      %p93 = scmp.ne.s32.totalorder %s76, %s92
      %p94 = scmp.eq.s32.totalorder %s21, 0
      %p95 = por %p93, %p94
      %p96 = scmp.le.s32.totalorder 1, %s15
      %p97 = scmp.lt.s32.totalorder %s15, 3
      %p98 = pnand %p96, %p97
      %p99 = pneg %p98
      // Predicated region
      $region9: #{tpu_custom_call.1} parent=5 // pred_check
        _
      $region10: #{tpu_custom_call.1} parent=5 // pred_check_branch
        %101 = sbr.rel (%p98) target = $region12
      $region11: #{tpu_custom_call.1} parent=5 // pred_region
        %s102 = ssub.s32 %s15, 1
        // Predicated region
        $region13: #{tpu_custom_call.1} parent=11 // pred_check
          %p103 = pneg %p36
        $region14: #{tpu_custom_call.1} parent=11 // pred_check_branch
          %105 = sbr.rel (%p103) target = $region16
        $region15: #{tpu_custom_call.1} parent=11 // pred_region
          %s107 = ssub.s32 24576, 24576
          %108 = vsyncadd [#allocation3], %s107
          %s109 = sshll.u32 [#allocation2], 4
          %s110 = int_to_ptr.vmem [resolvable:$true] %s109
          %115 = dma.hbm_to_vmem [thread:$0]  %s0, 24576, %s110, [#allocation3], 256, 256, 16
        $region16: #{tpu_custom_call.1} parent=11 // pred_fallthru
          _
      $region12: #{tpu_custom_call.1} parent=5 // pred_fallthru
        _
      %p116 = scmp.lt.s32.totalorder %s15, 2
      // Predicated region
      $region17: #{tpu_custom_call.1} parent=5 // pred_check
        %p117 = pneg %p116
      $region18: #{tpu_custom_call.1} parent=5 // pred_check_branch
        %119 = sbr.rel (%p117) target = $region20
      $region19: #{tpu_custom_call.1} parent=5 // pred_region
        // Predicated region
        $region21: #{tpu_custom_call.1} parent=19 // pred_check
          %p120 = pneg %p56
        $region22: #{tpu_custom_call.1} parent=19 // pred_check_branch
          %122 = sbr.rel (%p120) target = $region24
        $region23: #{tpu_custom_call.1} parent=19 // pred_region
          %s123 = sand.u32 %s46, 1
          %s124 = scalar_lea.sflag [#allocation6], %s123
          %s125 = sand.u32 %s46, 1
          %s126 = smul.addr %s125, 32
          %s127 = scalar_lea.vmem [#allocation5], %s126
          %s129 = ssub.s32 512, 512
          %130 = vsyncadd %s124, %s129
          %s131 = smul.addr %s15, 4
          %s132 = smul.addr %s131, 128
          %s133 = scalar_lea.hbm %s1, %s132
          %s134 = sshll.u32 %s127, 4
          %s135 = int_to_ptr.vmem [resolvable:$true] %s134
          %140 = dma.hbm_to_vmem [thread:$0]  %s133, 512, %s135, %s124, 256, 256, 16
        $region24: #{tpu_custom_call.1} parent=19 // pred_fallthru
          _
      $region20: #{tpu_custom_call.1} parent=5 // pred_fallthru
        _
      %p141 = scmp.le.s32.totalorder 1, %s15
      %p142 = scmp.lt.s32.totalorder %s15, 3
      %p143 = pnand %p141, %p142
      %p144 = pneg %p143
      // Predicated region
      $region25: #{tpu_custom_call.1} parent=5 // pred_check
        _
      $region26: #{tpu_custom_call.1} parent=5 // pred_check_branch
        %146 = sbr.rel (%p143) target = $region28
      $region27: #{tpu_custom_call.1} parent=5 // pred_region
        %s147 = ssub.s32 %s15, 1
        // Predicated region
        $region29: #{tpu_custom_call.1} parent=27 // pred_check
          %p148 = pneg %p36
        $region30: #{tpu_custom_call.1} parent=27 // pred_check_branch
          %150 = sbr.rel (%p148) target = $region32
        $region31: #{tpu_custom_call.1} parent=27 // pred_region
          %151 = dma.done [#allocation3], 24576
        $region32: #{tpu_custom_call.1} parent=27 // pred_fallthru
          _
        %s152 = sand.u32 %s49, 1
        %s153 = scalar_lea.sflag [#allocation6], %s152
        %s154 = sand.u32 %s49, 1
        %s155 = smul.addr %s154, 32
        %s156 = scalar_lea.vmem [#allocation5], %s155
        // Predicated region
        $region33: #{tpu_custom_call.1} parent=27 // pred_check
          %p157 = pneg %p62
        $region34: #{tpu_custom_call.1} parent=27 // pred_check_branch
          %159 = sbr.rel (%p157) target = $region36
        $region35: #{tpu_custom_call.1} parent=27 // pred_region
          %160 = dma.done %s153, 512
        $region36: #{tpu_custom_call.1} parent=27 // pred_fallthru
          _
        %p161 = pneg %p36
        %p162 = pneg %p33
        %s163 = sand.u32 %s49, 1
        %s164 = scalar_lea.sflag [#allocation6], %s163
        %s165 = sand.u32 %s49, 1
        %s166 = smul.addr %s165, 32
        %s167 = scalar_lea.vmem [#allocation5], %s166
        %p168 = pneg %p62
        %p169 = pneg %p59
        %p170 = pneg %p88
        %p171 = pneg %p85
        %s172 = sand.u32 %s75, 1
        %s173 = scalar_lea.sflag [#allocation4], %s172
        %s174 = sand.u32 %s75, 1
        %s175 = smul.addr %s174, 128
        %s176 = scalar_lea.vmem [#allocation7], %s175
        %v177 = vld [vmem:[%s156] sm:$0xff]
        %v178 = vld [vmem:[%s156 + $0x8] sm:$0xff]
        %v179 = vld [vmem:[%s156 + $0x10] sm:$0xff]
        %v180 = vld [vmem:[%s156 + $0x18] sm:$0xff]
        %181 = vst [vmem:[%s176] sm:$0xf] %v177
        %182 = vst [vmem:[%s176 + $0x8] sm:$0xf] %v178
        %v185 = vrot.slane %v177, 4
        %v186 = vrot.slane %v178, 4
        %189 = vst [vmem:[%s176 + $0x20] sm:$0xf] %v185
        %190 = vst [vmem:[%s176 + $0x28] sm:$0xf] %v186
        %191 = vst [vmem:[%s176 + $0x40] sm:$0xf] %v179
        %192 = vst [vmem:[%s176 + $0x48] sm:$0xf] %v180
        %v195 = vrot.slane %v179, 4
        %v196 = vrot.slane %v180, 4
        %199 = vst [vmem:[%s176 + $0x60] sm:$0xf] %v195
        %200 = vst [vmem:[%s176 + $0x68] sm:$0xf] %v196
        %v201 = vld [vmem:[#allocation2] sm:$0xff]
        %v202 = vld [vmem:[#allocation2 + $0x8] sm:$0xff]
        %v203 = vld [vmem:[#allocation2 + $0x10] sm:$0xff]
        %v204 = vld [vmem:[#allocation2 + $0x18] sm:$0xff]
        %v205 = vld [vmem:[#allocation2 + $0x20] sm:$0xff]
        %v206 = vld [vmem:[#allocation2 + $0x28] sm:$0xff]
        %v207 = vld [vmem:[#allocation2 + $0x30] sm:$0xff]
        %v208 = vld [vmem:[#allocation2 + $0x38] sm:$0xff]
        %v209 = vld [vmem:[#allocation2 + $0x40] sm:$0xff]
        %v210 = vld [vmem:[#allocation2 + $0x48] sm:$0xff]
        %v211 = vld [vmem:[#allocation2 + $0x50] sm:$0xff]
        %v212 = vld [vmem:[#allocation2 + $0x58] sm:$0xff]
        %v213 = vld [vmem:[#allocation2 + $0x60] sm:$0xff]
        %v214 = vld [vmem:[#allocation2 + $0x68] sm:$0xff]
        %v215 = vld [vmem:[#allocation2 + $0x70] sm:$0xff]
        %v216 = vld [vmem:[#allocation2 + $0x78] sm:$0xff]
        %v217 = vld [vmem:[#allocation2 + $0x80] sm:$0xff]
        %v218 = vld [vmem:[#allocation2 + $0x88] sm:$0xff]
        %v219 = vld [vmem:[#allocation2 + $0x90] sm:$0xff]
        %v220 = vld [vmem:[#allocation2 + $0x98] sm:$0xff]
        %v221 = vld [vmem:[#allocation2 + $0xa0] sm:$0xff]
        %v222 = vld [vmem:[#allocation2 + $0xa8] sm:$0xff]
        %v223 = vld [vmem:[#allocation2 + $0xb0] sm:$0xff]
        %v224 = vld [vmem:[#allocation2 + $0xb8] sm:$0xff]
        %v225 = vld [vmem:[#allocation2 + $0xc0] sm:$0xff]
        %v226 = vld [vmem:[#allocation2 + $0xc8] sm:$0xff]
        %v227 = vld [vmem:[#allocation2 + $0xd0] sm:$0xff]
        %v228 = vld [vmem:[#allocation2 + $0xd8] sm:$0xff]
        %v229 = vld [vmem:[#allocation2 + $0xe0] sm:$0xff]
        %v230 = vld [vmem:[#allocation2 + $0xe8] sm:$0xff]
        %v231 = vld [vmem:[#allocation2 + $0xf0] sm:$0xff]
        %v232 = vld [vmem:[#allocation2 + $0xf8] sm:$0xff]
        %v233 = vld [vmem:[#allocation2 + $0x100] sm:$0xff]
        %v234 = vld [vmem:[#allocation2 + $0x108] sm:$0xff]
        %v235 = vld [vmem:[#allocation2 + $0x110] sm:$0xff]
        %v236 = vld [vmem:[#allocation2 + $0x118] sm:$0xff]
        %v237 = vld [vmem:[#allocation2 + $0x120] sm:$0xff]
        %v238 = vld [vmem:[#allocation2 + $0x128] sm:$0xff]
        %v239 = vld [vmem:[#allocation2 + $0x130] sm:$0xff]
        %v240 = vld [vmem:[#allocation2 + $0x138] sm:$0xff]
        %v241 = vld [vmem:[#allocation2 + $0x140] sm:$0xff]
        %v242 = vld [vmem:[#allocation2 + $0x148] sm:$0xff]
        %v243 = vld [vmem:[#allocation2 + $0x150] sm:$0xff]
        %v244 = vld [vmem:[#allocation2 + $0x158] sm:$0xff]
        %v245 = vld [vmem:[#allocation2 + $0x160] sm:$0xff]
        %v246 = vld [vmem:[#allocation2 + $0x168] sm:$0xff]
        %v247 = vld [vmem:[#allocation2 + $0x170] sm:$0xff]
        %v248 = vld [vmem:[#allocation2 + $0x178] sm:$0xff]
        %v249 = vld [vmem:[#allocation2 + $0x180] sm:$0xff]
        %v250 = vld [vmem:[#allocation2 + $0x188] sm:$0xff]
        %v251 = vld [vmem:[#allocation2 + $0x190] sm:$0xff]
        %v252 = vld [vmem:[#allocation2 + $0x198] sm:$0xff]
        %v253 = vld [vmem:[#allocation2 + $0x1a0] sm:$0xff]
        %v254 = vld [vmem:[#allocation2 + $0x1a8] sm:$0xff]
        %v255 = vld [vmem:[#allocation2 + $0x1b0] sm:$0xff]
        %v256 = vld [vmem:[#allocation2 + $0x1b8] sm:$0xff]
        %v257 = vld [vmem:[#allocation2 + $0x1c0] sm:$0xff]
        %v258 = vld [vmem:[#allocation2 + $0x1c8] sm:$0xff]
        %v259 = vld [vmem:[#allocation2 + $0x1d0] sm:$0xff]
        %v260 = vld [vmem:[#allocation2 + $0x1d8] sm:$0xff]
        %v261 = vld [vmem:[#allocation2 + $0x1e0] sm:$0xff]
        %v262 = vld [vmem:[#allocation2 + $0x1e8] sm:$0xff]
        %v263 = vld [vmem:[#allocation2 + $0x1f0] sm:$0xff]
        %v264 = vld [vmem:[#allocation2 + $0x1f8] sm:$0xff]
        %265 = vmatprep.subr.mxu0 %v202
        %266 = vmatpush1.msra.mxu0 %v201
        %267 = vmatprep.subr.mxu0 %v204
        %268 = vmatpush1.msra.mxu0 %v203
        %269 = vmatprep.subr.mxu0 %v206
        %270 = vmatpush1.msra.mxu0 %v205
        %271 = vmatprep.subr.mxu0 %v208
        %272 = vmatpush1.msra.mxu0 %v207
        %273 = vmatprep.subr.mxu0 %v210
        %274 = vmatpush1.msra.mxu0 %v209
        %275 = vmatprep.subr.mxu0 %v212
        %276 = vmatpush1.msra.mxu0 %v211
        %277 = vmatprep.subr.mxu0 %v214
        %278 = vmatpush1.msra.mxu0 %v213
        %279 = vmatprep.subr.mxu0 %v216
        %280 = vmatpush1.msra.mxu0 %v215
        %281 = vmatprep.subr.mxu0 %v218
        %282 = vmatpush1.msra.mxu0 %v217
        %283 = vmatprep.subr.mxu0 %v220
        %284 = vmatpush1.msra.mxu0 %v219
        %285 = vmatprep.subr.mxu0 %v222
        %286 = vmatpush1.msra.mxu0 %v221
        %287 = vmatprep.subr.mxu0 %v224
        %288 = vmatpush1.msra.mxu0 %v223
        %289 = vmatprep.subr.mxu0 %v226
        %290 = vmatpush1.msra.mxu0 %v225
        %291 = vmatprep.subr.mxu0 %v228
        %292 = vmatpush1.msra.mxu0 %v227
        %293 = vmatprep.subr.mxu0 %v230
        %294 = vmatpush1.msra.mxu0 %v229
        %295 = vmatprep.subr.mxu0 %v232
        %296 = vmatpush1.msra.mxu0 %v231
        %297 = vmatprep.subr.mxu0 %v234
        %298 = vmatpush1.msra.mxu0 %v233
        %299 = vmatprep.subr.mxu0 %v236
        %300 = vmatpush1.msra.mxu0 %v235
        %301 = vmatprep.subr.mxu0 %v238
        %302 = vmatpush1.msra.mxu0 %v237
        %303 = vmatprep.subr.mxu0 %v240
        %304 = vmatpush1.msra.mxu0 %v239
        %305 = vmatprep.subr.mxu0 %v242
        %306 = vmatpush1.msra.mxu0 %v241
        %307 = vmatprep.subr.mxu0 %v244
        %308 = vmatpush1.msra.mxu0 %v243
        %309 = vmatprep.subr.mxu0 %v246
        %310 = vmatpush1.msra.mxu0 %v245
        %311 = vmatprep.subr.mxu0 %v248
        %312 = vmatpush1.msra.mxu0 %v247
        %313 = vmatprep.subr.mxu0 %v250
        %314 = vmatpush1.msra.mxu0 %v249
        %315 = vmatprep.subr.mxu0 %v252
        %316 = vmatpush1.msra.mxu0 %v251
        %317 = vmatprep.subr.mxu0 %v254
        %318 = vmatpush1.msra.mxu0 %v253
        %319 = vmatprep.subr.mxu0 %v256
        %320 = vmatpush1.msra.mxu0 %v255
        %321 = vmatprep.subr.mxu0 %v258
        %322 = vmatpush1.msra.mxu0 %v257
        %323 = vmatprep.subr.mxu0 %v260
        %324 = vmatpush1.msra.mxu0 %v259
        %325 = vmatprep.subr.mxu0 %v262
        %326 = vmatpush1.msra.mxu0 %v261
        %327 = vmatprep.subr.mxu0 %v264
        %328 = vmatpush1.msra.mxu0 %v263
        %329 = vmatprep.mubr.f32.mxu0 %v178
        %330 = vmatmul.mubr.f32.gmra.mrb[0].mxu0 %v177
        %v331 = vpop.f32.mrb[0].mxu0
        %v332 = vadd.f32 0.0, %v331
        %v333 = vpop.f32.mrb[0].mxu0
        %v334 = vadd.f32 0.0, %v333
        %335 = vmatprep.mubr.f32.mxu0 %v180
        %336 = vmatmul.mubr.f32.gmra.mrb[0].mxu0 %v179
        %v337 = vpop.f32.mrb[0].mxu0
        %v338 = vadd.f32 0.0, %v337
        %v339 = vpop.f32.mrb[0].mxu0
        %v340 = vadd.f32 0.0, %v339
        %341 = vdwg.mxu0
        %342 = vst [vmem:[%s176] sm:$0xf0] %v332
        %343 = vst [vmem:[%s176 + $0x8] sm:$0xf0] %v334
        %v346 = vrot.slane %v338, 4
        %v347 = vrot.slane %v340, 4
        %350 = vst [vmem:[%s176 + $0x20] sm:$0xf0] %v346
        %351 = vst [vmem:[%s176 + $0x28] sm:$0xf0] %v347
        %352 = vst [vmem:[%s176 + $0x40] sm:$0xf0] %v338
        %353 = vst [vmem:[%s176 + $0x48] sm:$0xf0] %v340
        %v356 = vrot.slane %v332, 4
        %v357 = vrot.slane %v334, 4
        %360 = vst [vmem:[%s176 + $0x60] sm:$0xf0] %v356
        %361 = vst [vmem:[%s176 + $0x68] sm:$0xf0] %v357
        %s362 = scalar_lea.vmem [#allocation2], 512
        %v363 = vld [vmem:[%s362] sm:$0xff]
        %v364 = vld [vmem:[%s362 + $0x8] sm:$0xff]
        %v365 = vld [vmem:[%s362 + $0x10] sm:$0xff]
        %v366 = vld [vmem:[%s362 + $0x18] sm:$0xff]
        %v367 = vld [vmem:[%s362 + $0x20] sm:$0xff]
        %v368 = vld [vmem:[%s362 + $0x28] sm:$0xff]
        %v369 = vld [vmem:[%s362 + $0x30] sm:$0xff]
        %v370 = vld [vmem:[%s362 + $0x38] sm:$0xff]
        %v371 = vld [vmem:[%s362 + $0x40] sm:$0xff]
        %v372 = vld [vmem:[%s362 + $0x48] sm:$0xff]
        %v373 = vld [vmem:[%s362 + $0x50] sm:$0xff]
        %v374 = vld [vmem:[%s362 + $0x58] sm:$0xff]
        %v375 = vld [vmem:[%s362 + $0x60] sm:$0xff]
        %v376 = vld [vmem:[%s362 + $0x68] sm:$0xff]
        %v377 = vld [vmem:[%s362 + $0x70] sm:$0xff]
        %v378 = vld [vmem:[%s362 + $0x78] sm:$0xff]
        %v379 = vld [vmem:[%s362 + $0x80] sm:$0xff]
        %v380 = vld [vmem:[%s362 + $0x88] sm:$0xff]
        %v381 = vld [vmem:[%s362 + $0x90] sm:$0xff]
        %v382 = vld [vmem:[%s362 + $0x98] sm:$0xff]
        %v383 = vld [vmem:[%s362 + $0xa0] sm:$0xff]
        %v384 = vld [vmem:[%s362 + $0xa8] sm:$0xff]
        %v385 = vld [vmem:[%s362 + $0xb0] sm:$0xff]
        %v386 = vld [vmem:[%s362 + $0xb8] sm:$0xff]
        %v387 = vld [vmem:[%s362 + $0xc0] sm:$0xff]
        %v388 = vld [vmem:[%s362 + $0xc8] sm:$0xff]
        %v389 = vld [vmem:[%s362 + $0xd0] sm:$0xff]
        %v390 = vld [vmem:[%s362 + $0xd8] sm:$0xff]
        %v391 = vld [vmem:[%s362 + $0xe0] sm:$0xff]
        %v392 = vld [vmem:[%s362 + $0xe8] sm:$0xff]
        %v393 = vld [vmem:[%s362 + $0xf0] sm:$0xff]
        %v394 = vld [vmem:[%s362 + $0xf8] sm:$0xff]
        %v395 = vld [vmem:[%s362 + $0x100] sm:$0xff]
        %v396 = vld [vmem:[%s362 + $0x108] sm:$0xff]
        %v397 = vld [vmem:[%s362 + $0x110] sm:$0xff]
        %v398 = vld [vmem:[%s362 + $0x118] sm:$0xff]
        %v399 = vld [vmem:[%s362 + $0x120] sm:$0xff]
        %v400 = vld [vmem:[%s362 + $0x128] sm:$0xff]
        %v401 = vld [vmem:[%s362 + $0x130] sm:$0xff]
        %v402 = vld [vmem:[%s362 + $0x138] sm:$0xff]
        %v403 = vld [vmem:[%s362 + $0x140] sm:$0xff]
        %v404 = vld [vmem:[%s362 + $0x148] sm:$0xff]
        %v405 = vld [vmem:[%s362 + $0x150] sm:$0xff]
        %v406 = vld [vmem:[%s362 + $0x158] sm:$0xff]
        %v407 = vld [vmem:[%s362 + $0x160] sm:$0xff]
        %v408 = vld [vmem:[%s362 + $0x168] sm:$0xff]
        %v409 = vld [vmem:[%s362 + $0x170] sm:$0xff]
        %v410 = vld [vmem:[%s362 + $0x178] sm:$0xff]
        %v411 = vld [vmem:[%s362 + $0x180] sm:$0xff]
        %v412 = vld [vmem:[%s362 + $0x188] sm:$0xff]
        %v413 = vld [vmem:[%s362 + $0x190] sm:$0xff]
        %v414 = vld [vmem:[%s362 + $0x198] sm:$0xff]
        %v415 = vld [vmem:[%s362 + $0x1a0] sm:$0xff]
        %v416 = vld [vmem:[%s362 + $0x1a8] sm:$0xff]
        %v417 = vld [vmem:[%s362 + $0x1b0] sm:$0xff]
        %v418 = vld [vmem:[%s362 + $0x1b8] sm:$0xff]
        %v419 = vld [vmem:[%s362 + $0x1c0] sm:$0xff]
        %v420 = vld [vmem:[%s362 + $0x1c8] sm:$0xff]
        %v421 = vld [vmem:[%s362 + $0x1d0] sm:$0xff]
        %v422 = vld [vmem:[%s362 + $0x1d8] sm:$0xff]
        %v423 = vld [vmem:[%s362 + $0x1e0] sm:$0xff]
        %v424 = vld [vmem:[%s362 + $0x1e8] sm:$0xff]
        %v425 = vld [vmem:[%s362 + $0x1f0] sm:$0xff]
        %v426 = vld [vmem:[%s362 + $0x1f8] sm:$0xff]
        %427 = vmatprep.subr.mxu0 %v364
        %428 = vmatpush1.msra.mxu0 %v363
        %429 = vmatprep.subr.mxu0 %v366
        %430 = vmatpush1.msra.mxu0 %v365
        %431 = vmatprep.subr.mxu0 %v368
        %432 = vmatpush1.msra.mxu0 %v367
        %433 = vmatprep.subr.mxu0 %v370
        %434 = vmatpush1.msra.mxu0 %v369
        %435 = vmatprep.subr.mxu0 %v372
        %436 = vmatpush1.msra.mxu0 %v371
        %437 = vmatprep.subr.mxu0 %v374
        %438 = vmatpush1.msra.mxu0 %v373
        %439 = vmatprep.subr.mxu0 %v376
        %440 = vmatpush1.msra.mxu0 %v375
        %441 = vmatprep.subr.mxu0 %v378
        %442 = vmatpush1.msra.mxu0 %v377
        %443 = vmatprep.subr.mxu0 %v380
        %444 = vmatpush1.msra.mxu0 %v379
        %445 = vmatprep.subr.mxu0 %v382
        %446 = vmatpush1.msra.mxu0 %v381
        %447 = vmatprep.subr.mxu0 %v384
        %448 = vmatpush1.msra.mxu0 %v383
        %449 = vmatprep.subr.mxu0 %v386
        %450 = vmatpush1.msra.mxu0 %v385
        %451 = vmatprep.subr.mxu0 %v388
        %452 = vmatpush1.msra.mxu0 %v387
        %453 = vmatprep.subr.mxu0 %v390
        %454 = vmatpush1.msra.mxu0 %v389
        %455 = vmatprep.subr.mxu0 %v392
        %456 = vmatpush1.msra.mxu0 %v391
        %457 = vmatprep.subr.mxu0 %v394
        %458 = vmatpush1.msra.mxu0 %v393
        %459 = vmatprep.subr.mxu0 %v396
        %460 = vmatpush1.msra.mxu0 %v395
        %461 = vmatprep.subr.mxu0 %v398
        %462 = vmatpush1.msra.mxu0 %v397
        %463 = vmatprep.subr.mxu0 %v400
        %464 = vmatpush1.msra.mxu0 %v399
        %465 = vmatprep.subr.mxu0 %v402
        %466 = vmatpush1.msra.mxu0 %v401
        %467 = vmatprep.subr.mxu0 %v404
        %468 = vmatpush1.msra.mxu0 %v403
        %469 = vmatprep.subr.mxu0 %v406
        %470 = vmatpush1.msra.mxu0 %v405
        %471 = vmatprep.subr.mxu0 %v408
        %472 = vmatpush1.msra.mxu0 %v407
        %473 = vmatprep.subr.mxu0 %v410
        %474 = vmatpush1.msra.mxu0 %v409
        %475 = vmatprep.subr.mxu0 %v412
        %476 = vmatpush1.msra.mxu0 %v411
        %477 = vmatprep.subr.mxu0 %v414
        %478 = vmatpush1.msra.mxu0 %v413
        %479 = vmatprep.subr.mxu0 %v416
        %480 = vmatpush1.msra.mxu0 %v415
        %481 = vmatprep.subr.mxu0 %v418
        %482 = vmatpush1.msra.mxu0 %v417
        %483 = vmatprep.subr.mxu0 %v420
        %484 = vmatpush1.msra.mxu0 %v419
        %485 = vmatprep.subr.mxu0 %v422
        %486 = vmatpush1.msra.mxu0 %v421
        %487 = vmatprep.subr.mxu0 %v424
        %488 = vmatpush1.msra.mxu0 %v423
        %489 = vmatprep.subr.mxu0 %v426
        %490 = vmatpush1.msra.mxu0 %v425
        %491 = vmatprep.mubr.f32.mxu0 %v178
        %492 = vmatmul.mubr.f32.gmra.mrb[0].mxu0 %v177
        %v493 = vpop.f32.mrb[0].mxu0
        %v494 = vadd.f32 0.0, %v493
        %v495 = vpop.f32.mrb[0].mxu0
        %v496 = vadd.f32 0.0, %v495
        %497 = vmatprep.mubr.f32.mxu0 %v180
        %498 = vmatmul.mubr.f32.gmra.mrb[0].mxu0 %v179
        %v499 = vpop.f32.mrb[0].mxu0
        %v500 = vadd.f32 0.0, %v499
        %v501 = vpop.f32.mrb[0].mxu0
        %v502 = vadd.f32 0.0, %v501
        %503 = vdwg.mxu0
        %504 = vst [vmem:[%s176 + $0x10] sm:$0xf] %v500
        %505 = vst [vmem:[%s176 + $0x18] sm:$0xf] %v502
        %v508 = vrot.slane %v500, 4
        %v509 = vrot.slane %v502, 4
        %512 = vst [vmem:[%s176 + $0x30] sm:$0xf] %v508
        %513 = vst [vmem:[%s176 + $0x38] sm:$0xf] %v509
        %514 = vst [vmem:[%s176 + $0x50] sm:$0xf] %v494
        %515 = vst [vmem:[%s176 + $0x58] sm:$0xf] %v496
        %v518 = vrot.slane %v494, 4
        %v519 = vrot.slane %v496, 4
        %522 = vst [vmem:[%s176 + $0x70] sm:$0xf] %v518
        %523 = vst [vmem:[%s176 + $0x78] sm:$0xf] %v519
        %s524 = scalar_lea.vmem [#allocation2], 1024
        %v525 = vld [vmem:[%s524] sm:$0xff]
        %v526 = vld [vmem:[%s524 + $0x8] sm:$0xff]
        %v527 = vld [vmem:[%s524 + $0x10] sm:$0xff]
        %v528 = vld [vmem:[%s524 + $0x18] sm:$0xff]
        %v529 = vld [vmem:[%s524 + $0x20] sm:$0xff]
        %v530 = vld [vmem:[%s524 + $0x28] sm:$0xff]
        %v531 = vld [vmem:[%s524 + $0x30] sm:$0xff]
        %v532 = vld [vmem:[%s524 + $0x38] sm:$0xff]
        %v533 = vld [vmem:[%s524 + $0x40] sm:$0xff]
        %v534 = vld [vmem:[%s524 + $0x48] sm:$0xff]
        %v535 = vld [vmem:[%s524 + $0x50] sm:$0xff]
        %v536 = vld [vmem:[%s524 + $0x58] sm:$0xff]
        %v537 = vld [vmem:[%s524 + $0x60] sm:$0xff]
        %v538 = vld [vmem:[%s524 + $0x68] sm:$0xff]
        %v539 = vld [vmem:[%s524 + $0x70] sm:$0xff]
        %v540 = vld [vmem:[%s524 + $0x78] sm:$0xff]
        %v541 = vld [vmem:[%s524 + $0x80] sm:$0xff]
        %v542 = vld [vmem:[%s524 + $0x88] sm:$0xff]
        %v543 = vld [vmem:[%s524 + $0x90] sm:$0xff]
        %v544 = vld [vmem:[%s524 + $0x98] sm:$0xff]
        %v545 = vld [vmem:[%s524 + $0xa0] sm:$0xff]
        %v546 = vld [vmem:[%s524 + $0xa8] sm:$0xff]
        %v547 = vld [vmem:[%s524 + $0xb0] sm:$0xff]
        %v548 = vld [vmem:[%s524 + $0xb8] sm:$0xff]
        %v549 = vld [vmem:[%s524 + $0xc0] sm:$0xff]
        %v550 = vld [vmem:[%s524 + $0xc8] sm:$0xff]
        %v551 = vld [vmem:[%s524 + $0xd0] sm:$0xff]
        %v552 = vld [vmem:[%s524 + $0xd8] sm:$0xff]
        %v553 = vld [vmem:[%s524 + $0xe0] sm:$0xff]
        %v554 = vld [vmem:[%s524 + $0xe8] sm:$0xff]
        %v555 = vld [vmem:[%s524 + $0xf0] sm:$0xff]
        %v556 = vld [vmem:[%s524 + $0xf8] sm:$0xff]
        %v557 = vld [vmem:[%s524 + $0x100] sm:$0xff]
        %v558 = vld [vmem:[%s524 + $0x108] sm:$0xff]
        %v559 = vld [vmem:[%s524 + $0x110] sm:$0xff]
        %v560 = vld [vmem:[%s524 + $0x118] sm:$0xff]
        %v561 = vld [vmem:[%s524 + $0x120] sm:$0xff]
        %v562 = vld [vmem:[%s524 + $0x128] sm:$0xff]
        %v563 = vld [vmem:[%s524 + $0x130] sm:$0xff]
        %v564 = vld [vmem:[%s524 + $0x138] sm:$0xff]
        %v565 = vld [vmem:[%s524 + $0x140] sm:$0xff]
        %v566 = vld [vmem:[%s524 + $0x148] sm:$0xff]
        %v567 = vld [vmem:[%s524 + $0x150] sm:$0xff]
        %v568 = vld [vmem:[%s524 + $0x158] sm:$0xff]
        %v569 = vld [vmem:[%s524 + $0x160] sm:$0xff]
        %v570 = vld [vmem:[%s524 + $0x168] sm:$0xff]
        %v571 = vld [vmem:[%s524 + $0x170] sm:$0xff]
        %v572 = vld [vmem:[%s524 + $0x178] sm:$0xff]
        %v573 = vld [vmem:[%s524 + $0x180] sm:$0xff]
        %v574 = vld [vmem:[%s524 + $0x188] sm:$0xff]
        %v575 = vld [vmem:[%s524 + $0x190] sm:$0xff]
        %v576 = vld [vmem:[%s524 + $0x198] sm:$0xff]
        %v577 = vld [vmem:[%s524 + $0x1a0] sm:$0xff]
        %v578 = vld [vmem:[%s524 + $0x1a8] sm:$0xff]
        %v579 = vld [vmem:[%s524 + $0x1b0] sm:$0xff]
        %v580 = vld [vmem:[%s524 + $0x1b8] sm:$0xff]
        %v581 = vld [vmem:[%s524 + $0x1c0] sm:$0xff]
        %v582 = vld [vmem:[%s524 + $0x1c8] sm:$0xff]
        %v583 = vld [vmem:[%s524 + $0x1d0] sm:$0xff]
        %v584 = vld [vmem:[%s524 + $0x1d8] sm:$0xff]
        %v585 = vld [vmem:[%s524 + $0x1e0] sm:$0xff]
        %v586 = vld [vmem:[%s524 + $0x1e8] sm:$0xff]
        %v587 = vld [vmem:[%s524 + $0x1f0] sm:$0xff]
        %v588 = vld [vmem:[%s524 + $0x1f8] sm:$0xff]
        %589 = vmatprep.subr.mxu0 %v526
        %590 = vmatpush1.msra.mxu0 %v525
        %591 = vmatprep.subr.mxu0 %v528
        %592 = vmatpush1.msra.mxu0 %v527
        %593 = vmatprep.subr.mxu0 %v530
        %594 = vmatpush1.msra.mxu0 %v529
        %595 = vmatprep.subr.mxu0 %v532
        %596 = vmatpush1.msra.mxu0 %v531
        %597 = vmatprep.subr.mxu0 %v534
        %598 = vmatpush1.msra.mxu0 %v533
        %599 = vmatprep.subr.mxu0 %v536
        %600 = vmatpush1.msra.mxu0 %v535
        %601 = vmatprep.subr.mxu0 %v538
        %602 = vmatpush1.msra.mxu0 %v537
        %603 = vmatprep.subr.mxu0 %v540
        %604 = vmatpush1.msra.mxu0 %v539
        %605 = vmatprep.subr.mxu0 %v542
        %606 = vmatpush1.msra.mxu0 %v541
        %607 = vmatprep.subr.mxu0 %v544
        %608 = vmatpush1.msra.mxu0 %v543
        %609 = vmatprep.subr.mxu0 %v546
        %610 = vmatpush1.msra.mxu0 %v545
        %611 = vmatprep.subr.mxu0 %v548
        %612 = vmatpush1.msra.mxu0 %v547
        %613 = vmatprep.subr.mxu0 %v550
        %614 = vmatpush1.msra.mxu0 %v549
        %615 = vmatprep.subr.mxu0 %v552
        %616 = vmatpush1.msra.mxu0 %v551
        %617 = vmatprep.subr.mxu0 %v554
        %618 = vmatpush1.msra.mxu0 %v553
        %619 = vmatprep.subr.mxu0 %v556
        %620 = vmatpush1.msra.mxu0 %v555
        %621 = vmatprep.subr.mxu0 %v558
        %622 = vmatpush1.msra.mxu0 %v557
        %623 = vmatprep.subr.mxu0 %v560
        %624 = vmatpush1.msra.mxu0 %v559
        %625 = vmatprep.subr.mxu0 %v562
        %626 = vmatpush1.msra.mxu0 %v561
        %627 = vmatprep.subr.mxu0 %v564
        %628 = vmatpush1.msra.mxu0 %v563
        %629 = vmatprep.subr.mxu0 %v566
        %630 = vmatpush1.msra.mxu0 %v565
        %631 = vmatprep.subr.mxu0 %v568
        %632 = vmatpush1.msra.mxu0 %v567
        %633 = vmatprep.subr.mxu0 %v570
        %634 = vmatpush1.msra.mxu0 %v569
        %635 = vmatprep.subr.mxu0 %v572
        %636 = vmatpush1.msra.mxu0 %v571
        %637 = vmatprep.subr.mxu0 %v574
        %638 = vmatpush1.msra.mxu0 %v573
        %639 = vmatprep.subr.mxu0 %v576
        %640 = vmatpush1.msra.mxu0 %v575
        %641 = vmatprep.subr.mxu0 %v578
        %642 = vmatpush1.msra.mxu0 %v577
        %643 = vmatprep.subr.mxu0 %v580
        %644 = vmatpush1.msra.mxu0 %v579
        %645 = vmatprep.subr.mxu0 %v582
        %646 = vmatpush1.msra.mxu0 %v581
        %647 = vmatprep.subr.mxu0 %v584
        %648 = vmatpush1.msra.mxu0 %v583
        %649 = vmatprep.subr.mxu0 %v586
        %650 = vmatpush1.msra.mxu0 %v585
        %651 = vmatprep.subr.mxu0 %v588
        %652 = vmatpush1.msra.mxu0 %v587
        %653 = vmatprep.mubr.f32.mxu0 %v178
        %654 = vmatmul.mubr.f32.gmra.mrb[0].mxu0 %v177
        %v655 = vpop.f32.mrb[0].mxu0
        %v656 = vadd.f32 0.0, %v655
        %v657 = vpop.f32.mrb[0].mxu0
        %v658 = vadd.f32 0.0, %v657
        %659 = vmatprep.mubr.f32.mxu0 %v180
        %660 = vmatmul.mubr.f32.gmra.mrb[0].mxu0 %v179
        %v661 = vpop.f32.mrb[0].mxu0
        %v662 = vadd.f32 0.0, %v661
        %v663 = vpop.f32.mrb[0].mxu0
        %v664 = vadd.f32 0.0, %v663
        %665 = vdwg.mxu0
        %666 = vst [vmem:[%s176 + $0x10] sm:$0xf0] %v662
        %667 = vst [vmem:[%s176 + $0x18] sm:$0xf0] %v664
        %v670 = vrot.slane %v656, 4
        %v671 = vrot.slane %v658, 4
        %674 = vst [vmem:[%s176 + $0x30] sm:$0xf0] %v670
        %675 = vst [vmem:[%s176 + $0x38] sm:$0xf0] %v671
        %676 = vst [vmem:[%s176 + $0x50] sm:$0xf0] %v656
        %677 = vst [vmem:[%s176 + $0x58] sm:$0xf0] %v658
        %v680 = vrot.slane %v662, 4
        %v681 = vrot.slane %v664, 4
        %684 = vst [vmem:[%s176 + $0x70] sm:$0xf0] %v680
        %685 = vst [vmem:[%s176 + $0x78] sm:$0xf0] %v681
        %s686 = sand.u32 %s75, 1
        %s687 = scalar_lea.sflag [#allocation4], %s686
        %s688 = sand.u32 %s75, 1
        %s689 = smul.addr %s688, 128
        %s690 = scalar_lea.vmem [#allocation7], %s689
        // Predicated region
        $region37: #{tpu_custom_call.1} parent=27 // pred_check
          %p691 = pneg %p85
        $region38: #{tpu_custom_call.1} parent=27 // pred_check_branch
          %693 = sbr.rel (%p691) target = $region40
        $region39: #{tpu_custom_call.1} parent=27 // pred_region
          %s695 = ssub.s32 2048, 2048
          %696 = vsyncadd %s687, %s695
          %s697 = smul.addr %s20, 16
          %s698 = smul.addr %s697, 128
          %s699 = scalar_lea.hbm %s2, %s698
          %s700 = sshll.u32 %s690, 4
          %s701 = int_to_ptr.vmem [resolvable:$true] %s700
          %706 = dma.vmem_to_hbm [thread:$0]  %s701, 2048, %s699, %s687, 256, 256, 16
        $region40: #{tpu_custom_call.1} parent=27 // pred_fallthru
          _
      $region28: #{tpu_custom_call.1} parent=5 // pred_fallthru
        _
      %p707 = scmp.le.s32.totalorder 2, %s15
      // Predicated region
      $region41: #{tpu_custom_call.1} parent=5 // pred_check
        %p708 = pneg %p707
      $region42: #{tpu_custom_call.1} parent=5 // pred_check_branch
        %710 = sbr.rel (%p708) target = $region44
      $region43: #{tpu_custom_call.1} parent=5 // pred_region
        %s711 = ssub.s32 %s15, 2
        // Predicated region
        $region45: #{tpu_custom_call.1} parent=43 // pred_check
          %p712 = pneg %p91
        $region46: #{tpu_custom_call.1} parent=43 // pred_check_branch
          %714 = sbr.rel (%p712) target = $region48
        $region47: #{tpu_custom_call.1} parent=43 // pred_region
          %s715 = sand.u32 %s76, 1
          %s716 = scalar_lea.sflag [#allocation4], %s715
          %s717 = sand.u32 %s76, 1
          %s718 = smul.addr %s717, 128
          %s719 = scalar_lea.vmem [#allocation7], %s718
          %720 = dma.done %s716, 2048
        $region48: #{tpu_custom_call.1} parent=43 // pred_fallthru
          _
      $region44: #{tpu_custom_call.1} parent=5 // pred_fallthru
        _
    $region6: #{tpu_custom_call.1} parent=1 // loop_footer
      %s19 = sadd.s32 1, %s15
    $region7: #{tpu_custom_call.1} parent=1 // loop_footer_branch
      %14 = sbr.rel target = $region3
    $region8: #{tpu_custom_call.1} parent=1 // loop_exit
      _
    %721 = vsyncpa [#allocation3], 1
    %s722 = scalar_lea.sflag [#allocation3], 1
    %723 = vsyncpa %s722, 1
    %724 = vsyncpa [#allocation6], 1
    %s725 = scalar_lea.sflag [#allocation6], 1
    %726 = vsyncpa %s725, 1
    %727 = vsyncpa [#allocation4], 1
    %s728 = scalar_lea.sflag [#allocation4], 1
    %729 = vsyncpa %s728, 1

</llo_original>
